<compile_context>
chip_gen: v7x
topology: tpu7x:2x2x1
jax: 0.10.0
libtpu: 0.0.40
codegen_flags: <defaults>
</compile_context>

<pallas_src>
import functools

import jax
import jax.numpy as jnp
from jax.experimental import pallas as pl
from jax.experimental.pallas import tpu as pltpu

EPS = 1e-5  # torch.nn.LayerNorm default eps

_VMEM_BUDGET = 24 << 20  # conservative; leaves headroom on v7x (64 MiB VMEM)


def _round_up(x, m):
    return ((x + m - 1) // m) * m


def _vmem_estimate(tm, tn, D, in_bytes, out_bytes):
    x_tile = 2 * tm * D * in_bytes        # double-buffered input rows
    scr = tm * D * 2                       # bf16 normalized-activation scratch
    w_tile = 2 * D * tn * 2                # bf16 weight tile, double-buffered
    b_tile = 2 * tn * 4                    # f32 bias tile
    o_tile = 2 * tm * tn * out_bytes       # double-buffered output tile
    gb = 2 * 2 * D * 4                     # gamma / beta
    return x_tile + scr + w_tile + b_tile + o_tile + gb


def _pick_tiles(rows, D, Dout, in_bytes, out_bytes, tm_cap, tn_cap):
    """Pick (tm, tn, dout_p) that are lane/sublane aligned and fit VMEM."""
    dout_p = _round_up(Dout, 128)
    tn_opts = sorted(
        (t for t in range(128, min(tn_cap, dout_p) + 1, 128) if dout_p % t == 0),
        reverse=True,
    )
    tm = min(tm_cap, _round_up(rows, 8))
    while True:
        for tn in tn_opts:
            if _vmem_estimate(tm, tn, D, in_bytes, out_bytes) <= _VMEM_BUDGET:
                return tm, tn, dout_p
        if tm <= 8:
            return 8, tn_opts[-1], dout_p  # best effort
        tm = max(8, (tm // 2) // 8 * 8)


def prenorm_linear_kernel(x_ref, g_ref, b_ref, w_ref, wb_ref, o_ref, y_scr):
    # x_ref: (tm, D)       g_ref/b_ref: (1, D)
    # w_ref: (D, tn) bf16  wb_ref: (1, tn) f32
    # o_ref: (tm, tn)      y_scr: (tm, D) bf16 scratch (normalized activations)

    # LayerNorm only on the first Dout tile of each row tile; later Dout tiles
    # reuse the cached bf16 normalized activations (scratch persists across j).
    @pl.when(pl.program_id(1) == 0)
    def _():
        x = x_ref[...].astype(jnp.float32)
        inv_d = 1.0 / x.shape[-1]
        # Both reductions issued back-to-back (single pass over x).
        s1 = jnp.sum(x, axis=-1, keepdims=True)
        s2 = jnp.sum(x * x, axis=-1, keepdims=True)
        mean = s1 * inv_d
        var = jnp.maximum(s2 * inv_d - mean * mean, 0.0)
        xn = (x - mean) * jax.lax.rsqrt(var + EPS)
        y = xn * g_ref[...].astype(jnp.float32) + b_ref[...].astype(jnp.float32)
        y_scr[...] = y.astype(y_scr.dtype)

    # fn: Linear(dim -> dim) on the MXU, bf16 inputs, f32 accumulation.
    out = jnp.dot(y_scr[...], w_ref[...], preferred_element_type=jnp.float32)
    out = out + wb_ref[...].astype(jnp.float32)
    o_ref[...] = out.astype(o_ref.dtype)


@functools.partial(jax.jit, static_argnames=("tm", "tn"))
def prenorm_linear(x, gamma, beta, w, wb, *, tm=256, tn=512):
    """PreNorm(dim, fn=Linear(dim, dim)):  fn(LayerNorm(x)).

    x: (B, S, D).  Returns (B, S, Dout).
    """
    B, S, D = x.shape
    Dout = w.shape[1]
    rows = B * S

    x2 = x.reshape(rows, D)
    g2 = gamma.reshape(1, D).astype(jnp.float32)
    b2 = beta.reshape(1, D).astype(jnp.float32)

    in_bytes = x.dtype.itemsize
    out_bytes = x.dtype.itemsize
    tm, tn, dout_p = _pick_tiles(rows, D, Dout, in_bytes, out_bytes, tm, tn)

    # --- Row tiling: pad rows to a multiple of tm (wasted compute only in the
    # last tile; keeps tm large for MXU utilization / pipeline efficiency).
    rows_p = _round_up(rows, tm)
    if rows_p != rows:
        x2 = jnp.pad(x2, ((0, rows_p - rows), (0, 0)))

    # --- Dout tiling: lane-dense multiple of 128; bf16 weight for the MXU.
    w_p = jnp.pad(w, ((0, 0), (0, dout_p - Dout))).astype(jnp.bfloat16)
    wb_p = jnp.pad(wb.reshape(1, Dout), ((0, 0), (0, dout_p - Dout)))
    wb_p = wb_p.astype(jnp.float32)

    grid = (rows_p // tm, dout_p // tn)

    cost = pl.CostEstimate(
        flops=2 * rows_p * D * dout_p,
        transcendentals=rows_p,  # one rsqrt per row
        bytes_accessed=(rows_p * D * in_bytes
                        + rows_p * dout_p * out_bytes
                        + grid[0] * D * dout_p * 2),
    )

    out2 = pl.pallas_call(
        prenorm_linear_kernel,
        out_shape=jax.ShapeDtypeStruct((rows_p, dout_p), x.dtype),
        grid_spec=pltpu.PrefetchScalarGridSpec(
            num_scalar_prefetch=0,
            grid=grid,
            in_specs=[
                pl.BlockSpec((tm, D), lambda i, j: (i, 0)),    # x rows
                pl.BlockSpec((1, D), lambda i, j: (0, 0)),     # gamma
                pl.BlockSpec((1, D), lambda i, j: (0, 0)),     # beta
                pl.BlockSpec((D, tn), lambda i, j: (0, j)),    # weight (bf16)
                pl.BlockSpec((1, tn), lambda i, j: (0, j)),    # bias
            ],
            out_specs=pl.BlockSpec((tm, tn), lambda i, j: (i, j)),
            scratch_shapes=[pltpu.VMEM((tm, D), jnp.bfloat16)],
        ),
        compiler_params=pltpu.CompilerParams(
            dimension_semantics=("parallel", "arbitrary")),
        cost_estimate=cost,
    )(x2, g2, b2, w_p, wb_p)

    # TODO(synk): add a K-axis (contraction) grid + f32 accumulator if D ever
    # grows beyond what a (D, tn) bf16 weight tile comfortably fits in VMEM.
    return out2[:rows, :Dout].reshape(B, S, Dout)


def prenorm_linear_ref(x, gamma, beta, w, wb):
    mean = jnp.mean(x, axis=-1, keepdims=True)
    var = jnp.mean((x - mean) ** 2, axis=-1, keepdims=True)
    xn = (x - mean) / jnp.sqrt(var + EPS)
    y = xn * gamma + beta
    return jnp.einsum("bsd,de->bse", y, w) + wb


if __name__ == "__main__":
    B, S, D = 2, 8, 32
    key = jax.random.PRNGKey(0)
    kx, kw, kb = jax.random.split(key, 3)

    x = jax.random.normal(kx, (B, S, D), dtype=jnp.float32)

    # LayerNorm params (torch defaults: weight=1, bias=0)
    gamma = jnp.ones((D,), dtype=jnp.float32)
    beta = jnp.zeros((D,), dtype=jnp.float32)

    # Deterministic Linear(dim, dim) params for fn
    w = jax.random.normal(kw, (D, D), dtype=jnp.float32) * 0.02
    wb = jax.random.normal(kb, (D,), dtype=jnp.float32) * 0.02

    out = prenorm_linear(x, gamma, beta, w, wb)
    out = jax.block_until_ready(out)

    ref = prenorm_linear_ref(x, gamma, beta, w, wb)
    assert out.shape == (B, S, D)
    # bf16 MXU inputs -> slightly looser tolerance than pure-f32.
    assert jnp.allclose(out, ref, atol=2e-2, rtol=2e-2), "mismatch vs reference"

    print("KERNEL_OK")
</pallas_src>

<mosaic_0001>
module attributes {stable_mosaic.version = 11 : i64} {
  func.func @prenorm_linear_kernel(%arg0: i32, %arg1: i32, %arg2: memref<16x32xf32, #tpu.memory_space<vmem>>, %arg3: memref<1x32xf32, #tpu.memory_space<vmem>>, %arg4: memref<1x32xf32, #tpu.memory_space<vmem>>, %arg5: memref<32x128xbf16, #tpu.memory_space<vmem>>, %arg6: memref<1x128xf32, #tpu.memory_space<vmem>>, %arg7: memref<16x128xf32, #tpu.memory_space<vmem>>, %arg8: memref<16x32xbf16, #tpu.memory_space<vmem>>) attributes {dimension_semantics = [#tpu.dimension_semantics<parallel>, #tpu.dimension_semantics<arbitrary>], iteration_bounds = array<i64: 1, 1>, scalar_prefetch = 0 : i64, scratch_operands = 1 : i64, tpu.core_type = #tpu.core_type<tc>, window_params = [{transform_indices = @transform_0, window_bounds = array<i64: 16, 32>}, {pipeline_mode = #tpu.pipeline_mode<synchronous>, transform_indices = @transform_1, window_bounds = array<i64: 1, 32>}, {pipeline_mode = #tpu.pipeline_mode<synchronous>, transform_indices = @transform_2, window_bounds = array<i64: 1, 32>}, {transform_indices = @transform_3, window_bounds = array<i64: 32, 128>}, {transform_indices = @transform_4, window_bounds = array<i64: 1, 128>}, {transform_indices = @transform_5, window_bounds = array<i64: 16, 128>}]} {
    %c0_i32 = arith.constant 0 : i32
    %0 = arith.cmpi eq, %arg1, %c0_i32 : i32
    %1 = arith.extui %0 : i1 to i32
    %c0_i32_0 = arith.constant 0 : i32
    %2 = arith.cmpi ne, %1, %c0_i32_0 : i32
    scf.if %2 {
      %c0_8 = arith.constant 0 : index
      %c0_9 = arith.constant 0 : index
      %10 = vector.load %arg2[%c0_8, %c0_9] : memref<16x32xf32, #tpu.memory_space<vmem>>, vector<16x32xf32>
      %cst_10 = arith.constant dense<0.000000e+00> : vector<16xf32>
      %11 = vector.multi_reduction <add>, %10, %cst_10 [1] : vector<16x32xf32> to vector<16xf32>
      %12 = vector.shape_cast %11 : vector<16xf32> to vector<16x1xf32>
      %13 = arith.mulf %10, %10 : vector<16x32xf32>
      %cst_11 = arith.constant dense<0.000000e+00> : vector<16xf32>
      %14 = vector.multi_reduction <add>, %13, %cst_11 [1] : vector<16x32xf32> to vector<16xf32>
      %15 = vector.shape_cast %14 : vector<16xf32> to vector<16x1xf32>
      %cst_12 = arith.constant 3.125000e-02 : f32
      %16 = vector.broadcast %cst_12 : f32 to vector<16x1xf32>
      %17 = arith.mulf %12, %16 : vector<16x1xf32>
      %cst_13 = arith.constant 3.125000e-02 : f32
      %18 = vector.broadcast %cst_13 : f32 to vector<16x1xf32>
      %19 = arith.mulf %15, %18 : vector<16x1xf32>
      %20 = arith.mulf %17, %17 : vector<16x1xf32>
      %21 = arith.subf %19, %20 : vector<16x1xf32>
      %cst_14 = arith.constant 0.000000e+00 : f32
      %22 = vector.broadcast %cst_14 : f32 to vector<16x1xf32>
      %23 = arith.maximumf %21, %22 : vector<16x1xf32>
      %24 = vector.broadcast %17 : vector<16x1xf32> to vector<16x32xf32>
      %25 = arith.subf %10, %24 : vector<16x32xf32>
      %cst_15 = arith.constant 9.99999974E-6 : f32
      %26 = vector.broadcast %cst_15 : f32 to vector<16x1xf32>
      %27 = arith.addf %23, %26 : vector<16x1xf32>
      %28 = math.rsqrt %27 : vector<16x1xf32>
      %29 = vector.broadcast %28 : vector<16x1xf32> to vector<16x32xf32>
      %30 = arith.mulf %25, %29 : vector<16x32xf32>
      %c0_16 = arith.constant 0 : index
      %c0_17 = arith.constant 0 : index
      %31 = vector.load %arg3[%c0_16, %c0_17] : memref<1x32xf32, #tpu.memory_space<vmem>>, vector<1x32xf32>
      %32 = vector.broadcast %31 : vector<1x32xf32> to vector<16x32xf32>
      %33 = arith.mulf %30, %32 : vector<16x32xf32>
      %c0_18 = arith.constant 0 : index
      %c0_19 = arith.constant 0 : index
      %34 = vector.load %arg4[%c0_18, %c0_19] : memref<1x32xf32, #tpu.memory_space<vmem>>, vector<1x32xf32>
      %35 = vector.broadcast %34 : vector<1x32xf32> to vector<16x32xf32>
      %36 = arith.addf %33, %35 : vector<16x32xf32>
      %37 = arith.truncf %36 : vector<16x32xf32> to vector<16x32xbf16>
      %c0_20 = arith.constant 0 : index
      %c0_21 = arith.constant 0 : index
      %38 = vector.load %arg8[%c0_20, %c0_21] : memref<16x32xbf16, #tpu.memory_space<vmem>>, vector<16x32xbf16>
      tpu.vector_store %arg8[%c0_20, %c0_21], %37 {strides = array<i32>} : memref<16x32xbf16, #tpu.memory_space<vmem>>, vector<16x32xbf16>,
    } else {
    }
    %c0 = arith.constant 0 : index
    %c0_1 = arith.constant 0 : index
    %3 = vector.load %arg8[%c0, %c0_1] : memref<16x32xbf16, #tpu.memory_space<vmem>>, vector<16x32xbf16>
    %c0_2 = arith.constant 0 : index
    %c0_3 = arith.constant 0 : index
    %4 = vector.load %arg5[%c0_2, %c0_3] : memref<32x128xbf16, #tpu.memory_space<vmem>>, vector<32x128xbf16>
    %cst = arith.constant dense<0.000000e+00> : vector<16x128xf32>
    %5 = tpu.matmul %3, %4, %cst {dimension_numbers = #tpu.dot_dimension_numbers<[1], [0], [0], [1], [0, 0, 1, 1], [], []>} : vector<16x32xbf16>, vector<32x128xbf16>, vector<16x128xf32> -> vector<16x128xf32>
    %c0_4 = arith.constant 0 : index
    %c0_5 = arith.constant 0 : index
    %6 = vector.load %arg6[%c0_4, %c0_5] : memref<1x128xf32, #tpu.memory_space<vmem>>, vector<1x128xf32>
    %7 = vector.broadcast %6 : vector<1x128xf32> to vector<16x128xf32>
    %8 = arith.addf %5, %7 : vector<16x128xf32>
    %c0_6 = arith.constant 0 : index
    %c0_7 = arith.constant 0 : index
    %9 = vector.load %arg7[%c0_6, %c0_7] : memref<16x128xf32, #tpu.memory_space<vmem>>, vector<16x128xf32>
    tpu.vector_store %arg7[%c0_6, %c0_7], %8 {strides = array<i32>} : memref<16x128xf32, #tpu.memory_space<vmem>>, vector<16x128xf32>,
    return
  }
  func.func @transform_0(%arg0: i32, %arg1: i32) -> (i32, i32) {
    %c0_i32 = arith.constant 0 : i32
    %c0_i32_0 = arith.constant 0 : i32
    return %arg0, %c0_i32 : i32, i32
  }
  func.func @transform_1(%arg0: i32, %arg1: i32) -> (i32, i32) {
    %c0_i32 = arith.constant 0 : i32
    %c0_i32_0 = arith.constant 0 : i32
    %c0_i32_1 = arith.constant 0 : i32
    return %c0_i32, %c0_i32_0 : i32, i32
  }
  func.func @transform_2(%arg0: i32, %arg1: i32) -> (i32, i32) {
    %c0_i32 = arith.constant 0 : i32
    %c0_i32_0 = arith.constant 0 : i32
    %c0_i32_1 = arith.constant 0 : i32
    return %c0_i32, %c0_i32_0 : i32, i32
  }
  func.func @transform_3(%arg0: i32, %arg1: i32) -> (i32, i32) {
    %c0_i32 = arith.constant 0 : i32
    %c0_i32_0 = arith.constant 0 : i32
    return %c0_i32, %arg1 : i32, i32
  }
  func.func @transform_4(%arg0: i32, %arg1: i32) -> (i32, i32) {
    %c0_i32 = arith.constant 0 : i32
    %c0_i32_0 = arith.constant 0 : i32
    return %c0_i32, %arg1 : i32, i32
  }
  func.func @transform_5(%arg0: i32, %arg1: i32) -> (i32, i32) {
    %c0_i32 = arith.constant 0 : i32
    return %arg0, %arg1 : i32, i32
  }
}

</mosaic_0001>

<llo_original>
// kernel: prenorm_linear.1
$region0: #{prenorm_linear.1}
  #allocation0 [shape = 'u32[]', space=smem, size = 0x4, offset = 0x4, fixed_abs, tag = 'smem constant byte address 0x4 - core index']
  #allocation1 [shape = 'u32[144,128]{1,0:T(1,128)}', space=vmem, size = 0x12000, scoped, tag = 'internal scratch']
  #allocation2 [shape = 'bf16[16,32]{1,0:T(16,128)(2,1)}', space=vmem, size = 0x1000, scoped, tag = 'scratch operand']
  %s0 = inlined_call_operand.vmem [shape: f32[16,32], index: 0, kind: input, shape index: {}]
  %s1 = inlined_call_operand.vmem [shape: f32[1,32], index: 1, kind: input, shape index: {}]
  %s2 = inlined_call_operand.vmem [shape: f32[1,32], index: 2, kind: input, shape index: {}]
  %s3 = inlined_call_operand.vmem [shape: bf16[32,128], index: 3, kind: input, shape index: {}]
  %s4 = inlined_call_operand.vmem [shape: f32[1,128], index: 4, kind: input, shape index: {}]
  %s5 = inlined_call_operand.vmem [shape: f32[16,128], index: 5, kind: output, shape index: {}]
  %s6 = sld [smem:[#allocation0]]
  $region34: #{prenorm_linear.1} parent=0
    _
  %s8 = ssub.s32 1, %s6
  %s9 = scalar_select 0, %s8, %s6
  // Predicated region
  $region2: #{prenorm_linear.1} parent=0 // pred_check
    _
  $region3: #{prenorm_linear.1} parent=0 // pred_check_branch
    %11 = sbr.rel (0) target = $region5
  $region4: #{prenorm_linear.1} parent=0 // pred_region
    _
  $region5: #{prenorm_linear.1} parent=0 // pred_fallthru
    _
  // Predicated region
  $region6: #{prenorm_linear.1} parent=0 // pred_check
    _
  $region7: #{prenorm_linear.1} parent=0 // pred_check_branch
    %13 = sbr.rel (0) target = $region9
  $region8: #{prenorm_linear.1} parent=0 // pred_region
    _
  $region9: #{prenorm_linear.1} parent=0 // pred_fallthru
    _
  // Predicated region
  $region10: #{prenorm_linear.1} parent=0 // pred_check
    _
  $region11: #{prenorm_linear.1} parent=0 // pred_check_branch
    %15 = sbr.rel (0) target = $region13
  $region12: #{prenorm_linear.1} parent=0 // pred_region
    _
  $region13: #{prenorm_linear.1} parent=0 // pred_fallthru
    _
  // Predicated region
  $region14: #{prenorm_linear.1} parent=0 // pred_check
    _
  $region15: #{prenorm_linear.1} parent=0 // pred_check_branch
    %17 = sbr.rel (0) target = $region17
  $region16: #{prenorm_linear.1} parent=0 // pred_region
    _
  $region17: #{prenorm_linear.1} parent=0 // pred_fallthru
    _
  // Predicated region
  $region18: #{prenorm_linear.1} parent=0 // pred_check
    _
  $region19: #{prenorm_linear.1} parent=0 // pred_check_branch
    %19 = sbr.rel (0) target = $region21
  $region20: #{prenorm_linear.1} parent=0 // pred_region
    _
  $region21: #{prenorm_linear.1} parent=0 // pred_fallthru
    _
  %p21 = scmp.eq.s32.totalorder 0, 0
  // Predicated region
  $region22: #{prenorm_linear.1} parent=0 // pred_check
    %p22 = pneg %p21
  $region23: #{prenorm_linear.1} parent=0 // pred_check_branch
    %24 = sbr.rel (%p22) target = $region25
  $region24: #{prenorm_linear.1} parent=0 // pred_region
    %v25 = vld [vmem:[%s0] sm:$0xff]
    %v26 = vld [vmem:[%s0 + $0x8] sm:$0xff]
    %vm27 = vcmask 261120
    %v28 = vsel %vm27, %v25, 0.0
    %29 = vadd.xlane.f32.xlu0 %v28
    %v30 = vpop.xlane.xlu0 %29
    %v31 = vsel %vm27, %v26, 0.0
    %32 = vadd.xlane.f32.xlu0 %v31
    %v33 = vpop.xlane.xlu0 %32
    %v34 = vmul.f32 %v25, %v25
    %v35 = vmul.f32 %v26, %v26
    %v36 = vsel %vm27, %v34, 0.0
    %37 = vadd.xlane.f32.xlu0 %v36
    %v38 = vpop.xlane.xlu0 %37
    %v39 = vsel %vm27, %v35, 0.0
    %40 = vadd.xlane.f32.xlu0 %v39
    %v41 = vpop.xlane.xlu0 %40
    %v42 = vmul.f32 %v30, 0.03125
    %v43 = vmul.f32 %v33, 0.03125
    %v44 = vmul.f32 %v38, 0.03125
    %v45 = vmul.f32 %v41, 0.03125
    %v46 = vmul.f32 %v42, %v42
    %v47 = vmul.f32 %v43, %v43
    %v48 = vsub.f32 %v44, %v46
    %v49 = vsub.f32 %v45, %v47
    %v50 = vmax.f32 %v48, 0.0
    %v51 = vmax.f32 %v49, 0.0
    %v52 = vsub.f32 %v25, %v42
    %v53 = vsub.f32 %v26, %v43
    %v54 = vadd.f32 %v50, 1e-05
    %v55 = vadd.f32 %v51, 1e-05
    %v56 = vrsqrt.pop %v54
    %v57 = vrsqrt.pop %v55
    %v58 = vmul.f32 %v52, %v56
    %v59 = vmul.f32 %v53, %v57
    %v60 = vld [vmem:[%s1] sm:$0x1]
    %v62 = vlaneseq
    %v63 = vshrl.u32 %v62, 7
    %v64 = vsub.s32 0, %v63
    %v65 = vrot.slane %v60, %v64
    %v67 = vmul.f32 %v58, %v65
    %v68 = vmul.f32 %v59, %v65
    %v69 = vld [vmem:[%s2] sm:$0x1]
    %v71 = vlaneseq
    %v72 = vshrl.u32 %v71, 7
    %v73 = vsub.s32 0, %v72
    %v74 = vrot.slane %v69, %v73
    %v76 = vadd.f32 %v67, %v74
    %v77 = vadd.f32 %v68, %v74
    %v78 = vpack.c.bf16 %v77, %v76
    %79 = vst.msk [vmem:[#allocation2] sm:$0xff] %vm27, %v78
  $region25: #{prenorm_linear.1} parent=0 // pred_fallthru
    _
  %v80 = vld [vmem:[#allocation2] sm:$0xff]
  %v81 = vld [vmem:[%s3] sm:$0xf]
  %v82 = vld [vmem:[%s3 + $0x4] sm:$0xf]
  %v83 = vld [vmem:[%s3 + $0x8] sm:$0xf]
  %v84 = vld [vmem:[%s3 + $0xc] sm:$0xf]
  %v85 = vld [vmem:[%s4] sm:$0x1]
  %v87 = vlaneseq
  %v88 = vshrl.u32 %v87, 7
  %v89 = vsub.s32 0, %v88
  %v90 = vrot.slane %v85, %v89
  %v96 = vunpack.c.l.b16 %v81
  %v97 = vunpack.c.l.b16 %v82
  %v98 = vunpack.c.l.b16 %v83
  %v99 = vunpack.c.l.b16 %v84
  %v100 = vpack.c.b16 %v97, %v96
  %v101 = vpack.c.b16 %v99, %v98
  %vm104 = vcmask 261120
  %v106 = vsel %vm104, %v80, 0
  %108 = vmatprep.subr.bf16.mxu0 0
  %109 = vmatpush1.bf16.msra.mxu0 %v100
  %110 = vmatprep.subr.bf16.mxu0 0
  %111 = vmatpush1.bf16.msra.mxu0 %v101
  %112 = vmatprep.subr.bf16.mxu0 0
  %113 = vmatpush1.bf16.msra.mxu0 0
  %114 = vmatprep.subr.bf16.mxu0 0
  %115 = vmatpush1.bf16.msra.mxu0 0
  %116 = vmatprep.subr.bf16.mxu0 0
  %117 = vmatpush1.bf16.msra.mxu0 0
  %118 = vmatprep.subr.bf16.mxu0 0
  %119 = vmatpush1.bf16.msra.mxu0 0
  %120 = vmatprep.subr.bf16.mxu0 0
  %121 = vmatpush1.bf16.msra.mxu0 0
  %122 = vmatprep.subr.bf16.mxu0 0
  %123 = vmatpush1.bf16.msra.mxu0 0
  %124 = vmatprep.subr.bf16.mxu0 0
  %125 = vmatpush1.bf16.msra.mxu0 0
  %126 = vmatprep.subr.bf16.mxu0 0
  %127 = vmatpush1.bf16.msra.mxu0 0
  %128 = vmatprep.subr.bf16.mxu0 0
  %129 = vmatpush1.bf16.msra.mxu0 0
  %130 = vmatprep.subr.bf16.mxu0 0
  %131 = vmatpush1.bf16.msra.mxu0 0
  %132 = vmatprep.subr.bf16.mxu0 0
  %133 = vmatpush1.bf16.msra.mxu0 0
  %134 = vmatprep.subr.bf16.mxu0 0
  %135 = vmatpush1.bf16.msra.mxu0 0
  %136 = vmatprep.subr.bf16.mxu0 0
  %137 = vmatpush1.bf16.msra.mxu0 0
  %138 = vmatprep.subr.bf16.mxu0 0
  %139 = vmatpush1.bf16.msra.mxu0 0
  %140 = vmatprep.mubr.bf16.mxu0 0
  %141 = vmatmul.mubr.bf16.gmra.mrb[0].mxu0 %v106
  %v142 = vpop.f32.mrb[0].mxu0
  %v143 = vadd.f32 %v90, %v142
  %v144 = vpop.f32.mrb[0].mxu0
  %v145 = vpop.f32.mrb[0].mxu0
  %v146 = vadd.f32 %v90, %v145
  %v147 = vpop.f32.mrb[0].mxu0
  %148 = vdwg.mxu0
  %149 = vst [vmem:[%s5] sm:$0xff] %v143
  %150 = vst [vmem:[%s5 + $0x8] sm:$0xff] %v146
  // Predicated region
  $region26: #{prenorm_linear.1} parent=0 // pred_check
    _
  $region27: #{prenorm_linear.1} parent=0 // pred_check_branch
    %152 = sbr.rel (0) target = $region29
  $region28: #{prenorm_linear.1} parent=0 // pred_region
    _
  $region29: #{prenorm_linear.1} parent=0 // pred_fallthru
    _
  // Predicated region
  $region30: #{prenorm_linear.1} parent=0 // pred_check
    _
  $region31: #{prenorm_linear.1} parent=0 // pred_check_branch
    %154 = sbr.rel (0) target = $region33
  $region32: #{prenorm_linear.1} parent=0 // pred_region
    _
  $region33: #{prenorm_linear.1} parent=0 // pred_fallthru
    _

</llo_original>
